<compile_context>
chip_gen: v7x
topology: tpu7x:2x2x1
jax: 0.10.0
libtpu: 0.0.40
codegen_flags: <defaults>
</compile_context>

<pallas_src>
import functools

import jax
import jax.numpy as jnp
from jax.experimental import pallas as pl
from jax.experimental.pallas import tpu as pltpu

_LANE = 128
_MAX_TILE = 32 * 1024            # cap on spatial lanes per block
_BLOCK_BUDGET = 8 * 1024 * 1024  # double-buffered (in + out) block budget, bytes
_MIN_GRID_STEPS = 4              # keep both v7x TensorCores fed
_VPU_CIN_MAX = 16                # use VPU broadcast-FMA path up to this C_in


def _round_up(a: int, b: int) -> int:
    return ((a + b - 1) // b) * b


def _pick_spatial_tile(hw, c_in, c_out, itemsize, n_batch):
    """Spatial tile (lanes) + number of tiles.

    Accounts for sublane padding of the channel axes and keeps the
    double-buffered in+out blocks within _BLOCK_BUDGET.  Guarantees at least
    _MIN_GRID_STEPS total grid steps when hw is large enough (megacore).
    """
    # Small images: one full-extent block (block dims equal to the full array
    # dims satisfy the (8,128) rule for any hw / channel count).
    if hw <= 1024:
        return hw, 1

    sub = max(8, 32 // itemsize)                # sublane granularity for dtype
    c_in_p = _round_up(c_in, sub)
    c_out_p = _round_up(c_out, sub)
    per_lane = 2 * (c_in_p + c_out_p) * itemsize     # double-buffered in + out

    cap = (_BLOCK_BUDGET // per_lane) // _LANE * _LANE
    cap = max(_LANE, min(_MAX_TILE, cap))
    # Shrink the tile until there are enough grid steps for both TensorCores.
    while n_batch * pl.cdiv(hw, cap) < _MIN_GRID_STEPS and cap > _LANE:
        cap = max(_LANE, (cap // 2) // _LANE * _LANE)

    n_tiles = max(pl.cdiv(hw, cap), 2)          # hw > 1024: keep tile < hw
    tile = _round_up(pl.cdiv(hw, n_tiles), _LANE)    # spread work evenly
    n_tiles = pl.cdiv(hw, tile)
    return tile, n_tiles


def _pick_chunk(tile):
    """Largest epilogue chunk (<= 2048 lanes) that exactly divides the tile."""
    for c in (2048, 1024, 512, 256, 128):
        if tile % c == 0:
            return c
    return tile          # full-extent small-image block


def _outconv_kernel(x_ref, w_ref, b_ref, o_ref, *, act, chunk, use_mxu):
    # x_ref: (1, C_in, tile)   w_ref: (C_out, C_in)   b_ref: (C_out, 1) f32
    # o_ref: (1, C_out, tile)  -- spatial (tile) is lane-dense on loads/stores.
    c_in = x_ref.shape[1]
    c_out = o_ref.shape[1]
    tile = x_ref.shape[2]
    n_chunks = tile // chunk                    # exact by construction

    w = w_ref[...].astype(jnp.float32)          # (C_out, C_in), tiny, resident
    # Loop-invariant lane-broadcasts hoisted out of the chunk loop
    # (JAX does not CSE broadcast_in_dim inside loops).
    bb = jnp.broadcast_to(b_ref[...], (c_out, chunk))       # (C_out, chunk)

    if use_mxu:
        def compute(xc):                        # xc: (C_in, chunk)
            return jnp.dot(w, xc.astype(jnp.float32),
                           preferred_element_type=jnp.float32,
                           precision=jax.lax.Precision.HIGHEST)
    else:
        # Tiny C_in: exact-f32 VPU broadcast-FMA over the input channels.
        wb = [jnp.broadcast_to(w[:, c:c + 1], (c_out, chunk))
              for c in range(c_in)]
        def compute(xc):
            xf = xc.astype(jnp.float32)
            acc = wb[0] * xf[0:1, :]
            for c in range(1, c_in):
                acc = acc + wb[c] * xf[c:c + 1, :]
            return acc

    def epilogue(y):
        y = y + bb
        if act:
            y = jnp.maximum(y, 0.0)
        return y.astype(o_ref.dtype)

    if n_chunks == 1:
        o_ref[0] = epilogue(compute(x_ref[0]))
    else:
        def body(j, carry):
            start = pl.multiple_of(j * chunk, chunk)
            xc = x_ref[0, :, pl.ds(start, chunk)]            # (C_in, chunk)
            o_ref[0, :, pl.ds(start, chunk)] = epilogue(compute(xc))
            return carry
        jax.lax.fori_loop(0, n_chunks, body, 0, unroll=(n_chunks <= 8))


def outconv_pallas(x_nchw, weight, bias, *, act=True):
    """1x1 conv (+ optional ReLU), matching nn.Conv2d(C_in, C_out, kernel_size=1).

    x_nchw: (N, C_in, H, W);  weight: (C_out, C_in, 1, 1);  bias: (C_out,)
    returns (N, C_out, H, W) in x_nchw.dtype
    """
    N, C_in, H, W = x_nchw.shape
    C_out = weight.shape[0]
    HW = H * W

    x = x_nchw.reshape(N, C_in, HW)             # free reshape, no transpose
    w_mat = weight.reshape(C_out, C_in)         # (C_out, C_in)
    b_col = bias.reshape(C_out, 1).astype(jnp.float32)

    itemsize = jnp.dtype(x.dtype).itemsize
    tile, n_tiles = _pick_spatial_tile(HW, C_in, C_out, itemsize, N)
    chunk = _pick_chunk(tile)
    use_mxu = C_in > _VPU_CIN_MAX

    kernel = functools.partial(_outconv_kernel, act=act, chunk=chunk,
                               use_mxu=use_mxu)

    out = pl.pallas_call(
        kernel,
        out_shape=jax.ShapeDtypeStruct((N, C_out, HW), x_nchw.dtype),
        grid=(N, n_tiles),
        in_specs=[
            pl.BlockSpec((1, C_in, tile), lambda n, s: (n, 0, s)),
            pl.BlockSpec((C_out, C_in), lambda n, s: (0, 0)),
            pl.BlockSpec((C_out, 1), lambda n, s: (0, 0)),
        ],
        out_specs=pl.BlockSpec((1, C_out, tile), lambda n, s: (n, 0, s)),
        compiler_params=pltpu.CompilerParams(
            dimension_semantics=("parallel", "parallel"),
            vmem_limit_bytes=32 * 1024 * 1024,
        ),
    )(x, w_mat, b_col)

    return out.reshape(N, C_out, H, W)


def outconv_reference(x_nchw, weight, bias, *, act=True):
    # Pure-JAX reference for the same semantics (full f32 precision).
    w_mat = weight.reshape(weight.shape[0], weight.shape[1])   # (C_out, C_in)
    y = jnp.einsum("nchw,oc->nohw", x_nchw, w_mat,
                   precision=jax.lax.Precision.HIGHEST)
    y = y + bias[None, :, None, None]
    if act:
        y = jnp.maximum(y, 0.0)
    return y.astype(x_nchw.dtype)


if __name__ == "__main__":
    key = jax.random.PRNGKey(0)
    kx, kw, kb = jax.random.split(key, 3)

    N, C_in, C_out, H, W = 2, 4, 3, 16, 16
    x = jax.random.normal(kx, (N, C_in, H, W), dtype=jnp.float32)
    # Conv2d weight shape: (C_out, C_in, 1, 1)
    weight = jax.random.normal(kw, (C_out, C_in, 1, 1), dtype=jnp.float32) * 0.1
    bias = jax.random.normal(kb, (C_out,), dtype=jnp.float32) * 0.1

    # act=True, H*W multiple of 128 (two spatial tiles, megacore-friendly grid)
    out = jax.block_until_ready(outconv_pallas(x, weight, bias, act=True))
    ref = outconv_reference(x, weight, bias, act=True)
    assert out.shape == (N, C_out, H, W)
    assert jnp.allclose(out, ref, atol=1e-5, rtol=1e-5), "mismatch (act=True)"

    # act=False, tiny non-128-multiple image -> single full-extent block
    H2 = W2 = 7
    x2 = jax.random.normal(kx, (N, C_in, H2, W2), dtype=jnp.float32)
    out2 = jax.block_until_ready(outconv_pallas(x2, weight, bias, act=False))
    ref2 = outconv_reference(x2, weight, bias, act=False)
    assert out2.shape == (N, C_out, H2, W2)
    assert jnp.allclose(out2, ref2, atol=1e-5, rtol=1e-5), "mismatch (act=False)"

    # Non-128-multiple H*W > 128 -> exercises the ragged last spatial block
    # (no wrapper pad/slice; Pallas masks the partial output block on store).
    H3, W3 = 9, 23
    x3 = jax.random.normal(kx, (N, C_in, H3, W3), dtype=jnp.float32)
    out3 = jax.block_until_ready(outconv_pallas(x3, weight, bias, act=True))
    ref3 = outconv_reference(x3, weight, bias, act=True)
    assert out3.shape == (N, C_out, H3, W3)
    assert jnp.allclose(out3, ref3, atol=1e-5, rtol=1e-5), "mismatch (ragged)"

    print("KERNEL_OK")
</pallas_src>

<mosaic_0001>
module attributes {stable_mosaic.version = 11 : i64} {
  func.func @_outconv_kernel(%arg0: i32, %arg1: i32, %arg2: memref<1x4x256xf32, #tpu.memory_space<vmem>>, %arg3: memref<3x4xf32, #tpu.memory_space<vmem>>, %arg4: memref<3x1xf32, #tpu.memory_space<vmem>>, %arg5: memref<1x3x256xf32, #tpu.memory_space<vmem>>) attributes {dimension_semantics = [#tpu.dimension_semantics<parallel>, #tpu.dimension_semantics<parallel>], iteration_bounds = array<i64: 2, 1>, scalar_prefetch = 0 : i64, scratch_operands = 0 : i64, tpu.core_type = #tpu.core_type<tc>, window_params = [{transform_indices = @transform_0, window_bounds = array<i64: 1, 4, 256>}, {pipeline_mode = #tpu.pipeline_mode<synchronous>, transform_indices = @transform_1, window_bounds = array<i64: 3, 4>}, {pipeline_mode = #tpu.pipeline_mode<synchronous>, transform_indices = @transform_2, window_bounds = array<i64: 3, 1>}, {transform_indices = @transform_3, window_bounds = array<i64: 1, 3, 256>}]} {
    %c0 = arith.constant 0 : index
    %c0_0 = arith.constant 0 : index
    %0 = vector.load %arg3[%c0, %c0_0] : memref<3x4xf32, #tpu.memory_space<vmem>>, vector<3x4xf32>
    %c0_1 = arith.constant 0 : index
    %c0_2 = arith.constant 0 : index
    %1 = vector.load %arg4[%c0_1, %c0_2] : memref<3x1xf32, #tpu.memory_space<vmem>>, vector<3x1xf32>
    %2 = vector.shape_cast %1 : vector<3x1xf32> to vector<3x1xf32>
    %3 = vector.broadcast %2 : vector<3x1xf32> to vector<3x256xf32>
    %4 = vector.extract_strided_slice %0 {offsets = [0, 0], sizes = [3, 1], strides = [1, 1]} : vector<3x4xf32> to vector<3x1xf32>
    %5 = vector.shape_cast %4 : vector<3x1xf32> to vector<3x1xf32>
    %6 = vector.broadcast %5 : vector<3x1xf32> to vector<3x256xf32>
    %7 = vector.extract_strided_slice %0 {offsets = [0, 1], sizes = [3, 1], strides = [1, 1]} : vector<3x4xf32> to vector<3x1xf32>
    %8 = vector.shape_cast %7 : vector<3x1xf32> to vector<3x1xf32>
    %9 = vector.broadcast %8 : vector<3x1xf32> to vector<3x256xf32>
    %10 = vector.extract_strided_slice %0 {offsets = [0, 2], sizes = [3, 1], strides = [1, 1]} : vector<3x4xf32> to vector<3x1xf32>
    %11 = vector.shape_cast %10 : vector<3x1xf32> to vector<3x1xf32>
    %12 = vector.broadcast %11 : vector<3x1xf32> to vector<3x256xf32>
    %13 = vector.extract_strided_slice %0 {offsets = [0, 3], sizes = [3, 1], strides = [1, 1]} : vector<3x4xf32> to vector<3x1xf32>
    %14 = vector.shape_cast %13 : vector<3x1xf32> to vector<3x1xf32>
    %15 = vector.broadcast %14 : vector<3x1xf32> to vector<3x256xf32>
    %c0_3 = arith.constant 0 : index
    %c0_4 = arith.constant 0 : index
    %c0_5 = arith.constant 0 : index
    %16 = vector.load %arg2[%c0_3, %c0_4, %c0_5] : memref<1x4x256xf32, #tpu.memory_space<vmem>>, vector<1x4x256xf32>
    %17 = vector.shape_cast %16 : vector<1x4x256xf32> to vector<4x256xf32>
    %18 = vector.extract_strided_slice %17 {offsets = [0, 0], sizes = [1, 256], strides = [1, 1]} : vector<4x256xf32> to vector<1x256xf32>
    %19 = vector.broadcast %18 : vector<1x256xf32> to vector<3x256xf32>
    %20 = arith.mulf %6, %19 : vector<3x256xf32>
    %21 = vector.extract_strided_slice %17 {offsets = [1, 0], sizes = [1, 256], strides = [1, 1]} : vector<4x256xf32> to vector<1x256xf32>
    %22 = vector.broadcast %21 : vector<1x256xf32> to vector<3x256xf32>
    %23 = arith.mulf %9, %22 : vector<3x256xf32>
    %24 = arith.addf %20, %23 : vector<3x256xf32>
    %25 = vector.extract_strided_slice %17 {offsets = [2, 0], sizes = [1, 256], strides = [1, 1]} : vector<4x256xf32> to vector<1x256xf32>
    %26 = vector.broadcast %25 : vector<1x256xf32> to vector<3x256xf32>
    %27 = arith.mulf %12, %26 : vector<3x256xf32>
    %28 = arith.addf %24, %27 : vector<3x256xf32>
    %29 = vector.extract_strided_slice %17 {offsets = [3, 0], sizes = [1, 256], strides = [1, 1]} : vector<4x256xf32> to vector<1x256xf32>
    %30 = vector.broadcast %29 : vector<1x256xf32> to vector<3x256xf32>
    %31 = arith.mulf %15, %30 : vector<3x256xf32>
    %32 = arith.addf %28, %31 : vector<3x256xf32>
    %33 = arith.addf %32, %3 : vector<3x256xf32>
    %cst = arith.constant 0.000000e+00 : f32
    %34 = vector.broadcast %cst : f32 to vector<3x256xf32>
    %35 = arith.maximumf %33, %34 : vector<3x256xf32>
    %c0_6 = arith.constant 0 : index
    %c0_7 = arith.constant 0 : index
    %c0_8 = arith.constant 0 : index
    %36 = vector.load %arg5[%c0_6, %c0_7, %c0_8] : memref<1x3x256xf32, #tpu.memory_space<vmem>>, vector<1x3x256xf32>
    %37 = vector.shape_cast %36 : vector<1x3x256xf32> to vector<3x256xf32>
    %38 = vector.shape_cast %35 : vector<3x256xf32> to vector<1x3x256xf32>
    tpu.vector_store %arg5[%c0_6, %c0_7, %c0_8], %38 {strides = array<i32>} : memref<1x3x256xf32, #tpu.memory_space<vmem>>, vector<1x3x256xf32>,
    return
  }
  func.func @transform_0(%arg0: i32, %arg1: i32) -> (i32, i32, i32) {
    %c0_i32 = arith.constant 0 : i32
    %c0_i32_0 = arith.constant 0 : i32
    return %arg0, %c0_i32, %arg1 : i32, i32, i32
  }
  func.func @transform_1(%arg0: i32, %arg1: i32) -> (i32, i32) {
    %c0_i32 = arith.constant 0 : i32
    %c0_i32_0 = arith.constant 0 : i32
    %c0_i32_1 = arith.constant 0 : i32
    return %c0_i32, %c0_i32_0 : i32, i32
  }
  func.func @transform_2(%arg0: i32, %arg1: i32) -> (i32, i32) {
    %c0_i32 = arith.constant 0 : i32
    %c0_i32_0 = arith.constant 0 : i32
    %c0_i32_1 = arith.constant 0 : i32
    return %c0_i32, %c0_i32_0 : i32, i32
  }
  func.func @transform_3(%arg0: i32, %arg1: i32) -> (i32, i32, i32) {
    %c0_i32 = arith.constant 0 : i32
    %c0_i32_0 = arith.constant 0 : i32
    return %arg0, %c0_i32, %arg1 : i32, i32, i32
  }
}

</mosaic_0001>

<llo_original>
// kernel: tpu_custom_call.1
$region0: #{tpu_custom_call.1}
  #allocation0 [shape = 'u32[]', space=smem, size = 0x4, offset = 0x4, fixed_abs, tag = 'smem constant byte address 0x4 - core index']
  #allocation1 [shape = 'u32[144,128]{1,0:T(1,128)}', space=vmem, size = 0x12000, scoped, tag = 'internal scratch']
  %s0 = inlined_call_operand.hbm [shape: f32[2,4,256], index: 0, kind: input, shape index: {}]
  %s1 = inlined_call_operand.vmem [shape: f32[3,4], index: 1, kind: input, shape index: {}]
  %s2 = inlined_call_operand.vmem [shape: f32[3,1], index: 2, kind: input, shape index: {}]
  %s3 = inlined_call_operand.vmem [shape: f32[2,3,256], index: 3, kind: output, shape index: {}]
  %s4 = sld [smem:[#allocation0]]
  $region49: #{tpu_custom_call.1} parent=0
    _
  %s6 = ssub.s32 1, %s4
  %s7 = scalar_select 0, %s6, %s4
  $region1: #{tpu_custom_call.1} parent=0
    #allocation2 [shape = 'u8[8192]{0}', space=vmem, size = 0x2000, scoped, tag = 'input window, operand 0']
    #allocation3 [shape = 's32[2]{0}', space=sflag, size = 0x8, scoped, tag = 'scoped memory for tpu_custom_call.1']
    %8 = vsyncpa [#allocation3], 0
    %s9 = scalar_lea.sflag [#allocation3], 1
    %10 = vsyncpa %s9, 0
    loop: start=0, step=1, limit=4
    $region2: #{tpu_custom_call.1} parent=1 // loop_pre_header
      _
    $region3: #{tpu_custom_call.1} parent=1 // loop_header
      %s12 = sphi 0, %s16
      %p13 = scmp.ge.s32.totalorder %s12, 4
      %s19 = sphi 0, %s31
      %s20 = sphi 0, %s27
      %s21 = sphi 0, %s19
      %s22 = sphi 0, %s20
      %s23 = sphi 0, %s21
      %s24 = sphi 0, %s22
      %s36 = sphi 0, %s38
      %s39 = sphi 0, %s36
      %s40 = sphi 0, %s39
      %s56 = sphi 0, %s40
      %s60 = sphi 0, %s60
      %s62 = sphi 0, %s60
      %s63 = sphi 0, %s62
      %s77 = sphi 0, %s63
      %s81 = sphi 0, %s81
      %s83 = sphi 0, %s81
      %s84 = sphi 0, %s83
      %s98 = sphi 0, %s84
      %s106 = sphi 0, %s108
      %s109 = sphi 0, %s106
      %s110 = sphi 0, %s109
      %s126 = sphi 0, %s110
    $region4: #{tpu_custom_call.1} parent=1 // loop_header_branch
      %15 = sbr.rel (%p13) target = $region8
    $region5: #{tpu_custom_call.1} parent=1 // loop_body
      %s17 = ssub.s32 %s12, 1
      %s18 = ssub.s32 %s12, 2
      %s25 = sadd.s32 1, %s20
      %p26 = scmp.ge.s32.totalorder %s25, 1
      %s27 = scalar_select %p26, 0, %s25
      %s28 = sadd.s32 1, %s19
      %s29 = scalar_select %p26, %s28, %s19
      %p30 = scmp.ge.s32.totalorder %s29, 2
      %s31 = scalar_select %p30, 0, %s29
      %s32 = ssub.s32 %s19, %s31
      %s33 = ssub.s32 %s20, %s27
      %s34 = sor.u32 %s32, %s33
      %p35 = scmp.eq.s32.totalorder %s34, 0
      %s37 = sadd.s32 %s36, 1
      %s38 = scalar_select %p35, %s36, %s37
      %p41 = pneg %p35
      %p42 = scmp.eq.s32.totalorder %s12, 1
      %p43 = por %p41, %p42
      %p44 = scmp.ne.s32.totalorder %s36, %s39
      %p45 = scmp.eq.s32.totalorder %s12, 0
      %p46 = por %p44, %p45
      %p47 = scmp.ne.s32.totalorder %s36, %s39
      %p48 = scmp.eq.s32.totalorder %s17, 1
      %p49 = por %p47, %p48
      %p50 = scmp.ne.s32.totalorder %s39, %s40
      %p51 = scmp.eq.s32.totalorder %s17, 0
      %p52 = por %p50, %p51
      %p53 = scmp.ne.s32.totalorder %s39, %s40
      %p54 = scmp.eq.s32.totalorder %s18, 1
      %p55 = por %p53, %p54
      %p57 = scmp.ne.s32.totalorder %s40, %s56
      %p58 = scmp.eq.s32.totalorder %s18, 0
      %p59 = por %p57, %p58
      %s61 = sadd.s32 %s60, 1
      %p64 = scmp.eq.s32.totalorder %s12, 1
      %p65 = scmp.ne.s32.totalorder %s60, %s62
      %p66 = scmp.eq.s32.totalorder %s12, 0
      %p67 = por %p65, %p66
      %p68 = scmp.ne.s32.totalorder %s60, %s62
      %p69 = scmp.eq.s32.totalorder %s17, 1
      %p70 = por %p68, %p69
      %p71 = scmp.ne.s32.totalorder %s62, %s63
      %p72 = scmp.eq.s32.totalorder %s17, 0
      %p73 = por %p71, %p72
      %p74 = scmp.ne.s32.totalorder %s62, %s63
      %p75 = scmp.eq.s32.totalorder %s18, 1
      %p76 = por %p74, %p75
      %p78 = scmp.ne.s32.totalorder %s63, %s77
      %p79 = scmp.eq.s32.totalorder %s18, 0
      %p80 = por %p78, %p79
      %s82 = sadd.s32 %s81, 1
      %p85 = scmp.eq.s32.totalorder %s12, 1
      %p86 = scmp.ne.s32.totalorder %s81, %s83
      %p87 = scmp.eq.s32.totalorder %s12, 0
      %p88 = por %p86, %p87
      %p89 = scmp.ne.s32.totalorder %s81, %s83
      %p90 = scmp.eq.s32.totalorder %s17, 1
      %p91 = por %p89, %p90
      %p92 = scmp.ne.s32.totalorder %s83, %s84
      %p93 = scmp.eq.s32.totalorder %s17, 0
      %p94 = por %p92, %p93
      %p95 = scmp.ne.s32.totalorder %s83, %s84
      %p96 = scmp.eq.s32.totalorder %s18, 1
      %p97 = por %p95, %p96
      %p99 = scmp.ne.s32.totalorder %s84, %s98
      %p100 = scmp.eq.s32.totalorder %s18, 0
      %p101 = por %p99, %p100
      %s102 = ssub.s32 %s19, %s31
      %s103 = ssub.s32 %s20, %s27
      %s104 = sor.u32 %s102, %s103
      %p105 = scmp.eq.s32.totalorder %s104, 0
      %s107 = sadd.s32 %s106, 1
      %s108 = scalar_select %p105, %s106, %s107
      %p111 = pneg %p105
      %p112 = scmp.eq.s32.totalorder %s12, 1
      %p113 = por %p111, %p112
      %p114 = scmp.ne.s32.totalorder %s106, %s109
      %p115 = scmp.eq.s32.totalorder %s12, 0
      %p116 = por %p114, %p115
      %p117 = scmp.ne.s32.totalorder %s106, %s109
      %p118 = scmp.eq.s32.totalorder %s17, 1
      %p119 = por %p117, %p118
      %p120 = scmp.ne.s32.totalorder %s109, %s110
      %p121 = scmp.eq.s32.totalorder %s17, 0
      %p122 = por %p120, %p121
      %p123 = scmp.ne.s32.totalorder %s109, %s110
      %p124 = scmp.eq.s32.totalorder %s18, 1
      %p125 = por %p123, %p124
      %p127 = scmp.ne.s32.totalorder %s110, %s126
      %p128 = scmp.eq.s32.totalorder %s18, 0
      %p129 = por %p127, %p128
      %p130 = scmp.le.s32.totalorder 1, %s12
      %p131 = scmp.lt.s32.totalorder %s12, 3
      %p132 = pnand %p130, %p131
      %p133 = pneg %p132
      // Predicated region
      $region9: #{tpu_custom_call.1} parent=5 // pred_check
        _
      $region10: #{tpu_custom_call.1} parent=5 // pred_check_branch
        %135 = sbr.rel (%p132) target = $region12
      $region11: #{tpu_custom_call.1} parent=5 // pred_region
        %s136 = ssub.s32 %s12, 1
        // Predicated region
        $region13: #{tpu_custom_call.1} parent=11 // pred_check
          %p137 = pneg %p73
        $region14: #{tpu_custom_call.1} parent=11 // pred_check_branch
          %139 = sbr.rel (%p137) target = $region16
        $region15: #{tpu_custom_call.1} parent=11 // pred_region
          _
        $region16: #{tpu_custom_call.1} parent=11 // pred_fallthru
          _
        // Predicated region
        $region17: #{tpu_custom_call.1} parent=11 // pred_check
          %p140 = pneg %p94
        $region18: #{tpu_custom_call.1} parent=11 // pred_check_branch
          %142 = sbr.rel (%p140) target = $region20
        $region19: #{tpu_custom_call.1} parent=11 // pred_region
          _
        $region20: #{tpu_custom_call.1} parent=11 // pred_fallthru
          _
      $region12: #{tpu_custom_call.1} parent=5 // pred_fallthru
        _
      %p143 = scmp.lt.s32.totalorder %s12, 2
      // Predicated region
      $region21: #{tpu_custom_call.1} parent=5 // pred_check
        %p144 = pneg %p143
      $region22: #{tpu_custom_call.1} parent=5 // pred_check_branch
        %146 = sbr.rel (%p144) target = $region24
      $region23: #{tpu_custom_call.1} parent=5 // pred_region
        // Predicated region
        $region25: #{tpu_custom_call.1} parent=23 // pred_check
          %p147 = pneg %p46
        $region26: #{tpu_custom_call.1} parent=23 // pred_check_branch
          %149 = sbr.rel (%p147) target = $region28
        $region27: #{tpu_custom_call.1} parent=23 // pred_region
          %s150 = sand.u32 %s36, 1
          %s151 = scalar_lea.sflag [#allocation3], %s150
          %s152 = sand.u32 %s36, 1
          %s153 = smul.addr %s152, 8
          %s154 = scalar_lea.vmem [#allocation2], %s153
          %s155 = smul.u32 2, %s20
          %s157 = ssub.s32 128, 128
          %158 = vsyncadd %s151, %s157
          %s159 = smul.addr %s19, 2
          %s160 = sadd.s32 %s155, %s159
          %s161 = smul.addr %s160, 64
          %s162 = scalar_lea.hbm %s0, %s161
          %s164 = sshll.u32 %s154, 4
          %s165 = int_to_ptr.vmem [resolvable:$true] %s164
          %167 = dma.hbm_to_vmem [thread:$0]  %s162, 128, %s165, %s151
        $region28: #{tpu_custom_call.1} parent=23 // pred_fallthru
          _
      $region24: #{tpu_custom_call.1} parent=5 // pred_fallthru
        _
      %p168 = scmp.le.s32.totalorder 1, %s12
      %p169 = scmp.lt.s32.totalorder %s12, 3
      %p170 = pnand %p168, %p169
      %p171 = pneg %p170
      // Predicated region
      $region29: #{tpu_custom_call.1} parent=5 // pred_check
        _
      $region30: #{tpu_custom_call.1} parent=5 // pred_check_branch
        %173 = sbr.rel (%p170) target = $region32
      $region31: #{tpu_custom_call.1} parent=5 // pred_region
        %s174 = ssub.s32 %s12, 1
        %s175 = sand.u32 %s39, 1
        %s176 = scalar_lea.sflag [#allocation3], %s175
        %s177 = sand.u32 %s39, 1
        %s178 = smul.addr %s177, 8
        %s179 = scalar_lea.vmem [#allocation2], %s178
        // Predicated region
        $region33: #{tpu_custom_call.1} parent=31 // pred_check
          %p180 = pneg %p52
        $region34: #{tpu_custom_call.1} parent=31 // pred_check_branch
          %182 = sbr.rel (%p180) target = $region36
        $region35: #{tpu_custom_call.1} parent=31 // pred_region
          %183 = dma.done %s176, 128
        $region36: #{tpu_custom_call.1} parent=31 // pred_fallthru
          _
        %s184 = sand.u32 %s39, 1
        %s185 = scalar_lea.sflag [#allocation3], %s184
        %s186 = sand.u32 %s39, 1
        %s187 = smul.addr %s186, 8
        %s188 = scalar_lea.vmem [#allocation2], %s187
        %p189 = pneg %p52
        %p190 = pneg %p49
        %p191 = pneg %p73
        %p192 = pneg %p70
        %p193 = pneg %p94
        %p194 = pneg %p91
        %p195 = pneg %p122
        %p196 = pneg %p119
        %s197 = smul.u32 2, %s22
        %p198 = scmp.lt.s32.totalorder %s21, 1
        %s199 = scalar_select %p198, %s21, 1
        %p200 = scmp.lt.s32.totalorder %s197, 1
        %s201 = scalar_select %p200, %s197, 1
        %s202 = smul.addr %s199, 2
        %s203 = sadd.s32 %s201, %s202
        %s204 = smul.addr %s203, 4
        %s205 = scalar_lea.vmem %s3, %s204
        %s206 = smul.u32 2, %s22
        %s207 = smul.u32 2, %s22
        %p208 = scmp.lt.s32.totalorder %s21, 1
        %s209 = scalar_select %p208, %s21, 1
        %p210 = scmp.lt.s32.totalorder %s207, 1
        %s211 = scalar_select %p210, %s207, 1
        %s212 = smul.addr %s209, 2
        %s213 = sadd.s32 %s211, %s212
        %s214 = smul.addr %s213, 4
        %s215 = scalar_lea.vmem %s3, %s214
        %s216 = smul.u32 2, %s22
        %v217 = vld [vmem:[%s1] sm:$0x7]
        %v218 = vld [vmem:[%s2] sm:$0x7]
        %220 = vset.pattern.permute.xlu0 0
        %221 = vperm.xlu0 %220, %v218
        %v222 = vpop.permute.xlu0 %221
        %225 = vset.pattern.permute.xlu0 0
        %226 = vperm.xlu0 %225, %v217
        %v227 = vpop.permute.xlu0 %226
        %229 = vset.pattern.permute.xlu0 1
        %230 = vperm.xlu0 %229, %v217
        %v231 = vpop.permute.xlu0 %230
        %233 = vset.pattern.permute.xlu0 2
        %234 = vperm.xlu0 %233, %v217
        %v235 = vpop.permute.xlu0 %234
        %237 = vset.pattern.permute.xlu0 3
        %238 = vperm.xlu0 %237, %v217
        %v239 = vpop.permute.xlu0 %238
        %v241 = vld [vmem:[%s179] sm:$0xff]
        %v243 = vlaneseq
        %v244 = vshrl.u32 %v243, 7
        %v245 = vsub.s32 0, %v244
        %v246 = vrot.slane %v241, %v245
        %v247 = vlaneseq
        %v248 = vshrl.u32 %v247, 7
        %v249 = vsub.s32 4, %v248
        %v250 = vrot.slane %v241, %v249
        %v253 = vlaneseq
        %v254 = vshrl.u32 %v253, 7
        %v255 = vsub.s32 0, %v254
        %v256 = vrot.slane %v246, %v255
        %v257 = vlaneseq
        %v258 = vshrl.u32 %v257, 7
        %v259 = vsub.s32 0, %v258
        %v260 = vrot.slane %v250, %v259
        %v261 = vmul.f32 %v227, %v256
        %v262 = vmul.f32 %v227, %v260
        %v263 = vlaneseq
        %v264 = vshrl.u32 %v263, 7
        %v265 = vsub.s32 1, %v264
        %v266 = vrot.slane %v241, %v265
        %v267 = vlaneseq
        %v268 = vshrl.u32 %v267, 7
        %v269 = vsub.s32 5, %v268
        %v270 = vrot.slane %v241, %v269
        %v273 = vlaneseq
        %v274 = vshrl.u32 %v273, 7
        %v275 = vsub.s32 1, %v274
        %v276 = vrot.slane %v266, %v275
        %v277 = vlaneseq
        %v278 = vshrl.u32 %v277, 7
        %v279 = vsub.s32 1, %v278
        %v280 = vrot.slane %v270, %v279
        %v281 = vmul.f32 %v231, %v276
        %v282 = vmul.f32 %v231, %v280
        %v283 = vadd.f32 %v261, %v281
        %v284 = vadd.f32 %v262, %v282
        %v285 = vlaneseq
        %v286 = vshrl.u32 %v285, 7
        %v287 = vsub.s32 2, %v286
        %v288 = vrot.slane %v241, %v287
        %v289 = vlaneseq
        %v290 = vshrl.u32 %v289, 7
        %v291 = vsub.s32 6, %v290
        %v292 = vrot.slane %v241, %v291
        %v295 = vlaneseq
        %v296 = vshrl.u32 %v295, 7
        %v297 = vsub.s32 2, %v296
        %v298 = vrot.slane %v288, %v297
        %v299 = vlaneseq
        %v300 = vshrl.u32 %v299, 7
        %v301 = vsub.s32 2, %v300
        %v302 = vrot.slane %v292, %v301
        %v303 = vmul.f32 %v235, %v298
        %v304 = vmul.f32 %v235, %v302
        %v305 = vadd.f32 %v283, %v303
        %v306 = vadd.f32 %v284, %v304
        %v307 = vlaneseq
        %v308 = vshrl.u32 %v307, 7
        %v309 = vsub.s32 3, %v308
        %v310 = vrot.slane %v241, %v309
        %v311 = vlaneseq
        %v312 = vshrl.u32 %v311, 7
        %v313 = vsub.s32 7, %v312
        %v314 = vrot.slane %v241, %v313
        %v317 = vlaneseq
        %v318 = vshrl.u32 %v317, 7
        %v319 = vsub.s32 3, %v318
        %v320 = vrot.slane %v310, %v319
        %v321 = vlaneseq
        %v322 = vshrl.u32 %v321, 7
        %v323 = vsub.s32 3, %v322
        %v324 = vrot.slane %v314, %v323
        %v325 = vmul.f32 %v239, %v320
        %v326 = vmul.f32 %v239, %v324
        %v327 = vadd.f32 %v305, %v325
        %v328 = vadd.f32 %v306, %v326
        %v329 = vadd.f32 %v327, %v222
        %v330 = vadd.f32 %v328, %v222
        %v331 = vmax.f32 %v329, 0.0
        %v332 = vmax.f32 %v330, 0.0
        %v335 = vcombine.low %v331, %v332
        %337 = vst [vmem:[%s215] sm:$0x77] %v335
        %s338 = smul.u32 2, %s22
        %p339 = scmp.lt.s32.totalorder %s21, 1
        %s340 = scalar_select %p339, %s21, 1
        %p341 = scmp.lt.s32.totalorder %s338, 1
        %s342 = scalar_select %p341, %s338, 1
        %s343 = smul.addr %s340, 2
        %s344 = sadd.s32 %s342, %s343
        %s345 = smul.addr %s344, 4
        %s346 = scalar_lea.vmem %s3, %s345
        // Predicated region
        $region37: #{tpu_custom_call.1} parent=31 // pred_check
          %p347 = pneg %p119
        $region38: #{tpu_custom_call.1} parent=31 // pred_check_branch
          %349 = sbr.rel (%p347) target = $region40
        $region39: #{tpu_custom_call.1} parent=31 // pred_region
          %s350 = smul.u32 2, %s22
        $region40: #{tpu_custom_call.1} parent=31 // pred_fallthru
          _
      $region32: #{tpu_custom_call.1} parent=5 // pred_fallthru
        _
      %p351 = scmp.le.s32.totalorder 2, %s12
      // Predicated region
      $region41: #{tpu_custom_call.1} parent=5 // pred_check
        %p352 = pneg %p351
      $region42: #{tpu_custom_call.1} parent=5 // pred_check_branch
        %354 = sbr.rel (%p352) target = $region44
      $region43: #{tpu_custom_call.1} parent=5 // pred_region
        %s355 = ssub.s32 %s12, 2
        // Predicated region
        $region45: #{tpu_custom_call.1} parent=43 // pred_check
          %p356 = pneg %p125
        $region46: #{tpu_custom_call.1} parent=43 // pred_check_branch
          %358 = sbr.rel (%p356) target = $region48
        $region47: #{tpu_custom_call.1} parent=43 // pred_region
          %s359 = smul.u32 2, %s24
          %p360 = scmp.lt.s32.totalorder %s23, 1
          %s361 = scalar_select %p360, %s23, 1
          %p362 = scmp.lt.s32.totalorder %s359, 1
          %s363 = scalar_select %p362, %s359, 1
          %s364 = smul.addr %s361, 2
          %s365 = sadd.s32 %s363, %s364
          %s366 = smul.addr %s365, 4
          %s367 = scalar_lea.vmem %s3, %s366
        $region48: #{tpu_custom_call.1} parent=43 // pred_fallthru
          _
      $region44: #{tpu_custom_call.1} parent=5 // pred_fallthru
        _
    $region6: #{tpu_custom_call.1} parent=1 // loop_footer
      %s16 = sadd.s32 1, %s12
    $region7: #{tpu_custom_call.1} parent=1 // loop_footer_branch
      %11 = sbr.rel target = $region3
    $region8: #{tpu_custom_call.1} parent=1 // loop_exit
      _
    %368 = vsyncpa [#allocation3], 1
    %s369 = scalar_lea.sflag [#allocation3], 1
    %370 = vsyncpa %s369, 1

</llo_original>
